<compile_context>
chip_gen: v5e
topology: v5e:2x2
jax: 0.10.0
libtpu: 0.0.40
codegen_flags: <defaults>
</compile_context>

<pallas_src>
import functools

import jax
import jax.numpy as jnp
from jax.experimental import pallas as pl
from jax.experimental.pallas import tpu as pltpu


# ---------------------------------------------------------------------------
# Kernel 1: per-batch fused K/V projection (+ softmax scale), head-major out.
# ---------------------------------------------------------------------------
def _kv_proj_kernel(k_ref, v_ref, wk_ref, bk_ref, wv_ref, bv_ref,
                    ko_ref, vo_ref, *, num_heads, k_dim, v_dim, scale,
                    compute_dtype):
    k = k_ref[0]                                   # (TK, D)
    v = v_ref[0]                                   # (TK, D)
    # One wide MXU matmul per projection (N = H*dim), f32 accumulation.
    # Fold 1/sqrt(K_dim) into K here: applied once per key row instead of on
    # every (TQ, Lk) score tile inside the attention kernel.
    kw = ((jnp.dot(k, wk_ref[...], preferred_element_type=jnp.float32)
           + bk_ref[0]) * scale).astype(compute_dtype)         # (TK, H*Kd)
    vw = (jnp.dot(v, wv_ref[...], preferred_element_type=jnp.float32)
          + bv_ref[0]).astype(compute_dtype)                   # (TK, H*Vd)
    # Split heads ONCE per batch element (not per Lq tile) and store
    # head-major so the attention kernel's per-head loads are aligned tiles.
    for h in range(num_heads):                     # static, small
        ko_ref[0, h] = kw[:, h * k_dim:(h + 1) * k_dim]
        vo_ref[0, h] = vw[:, h * v_dim:(h + 1) * v_dim]


# ---------------------------------------------------------------------------
# Kernel 2: Q projection + per-head attention + fused output projection for
# one (batch, Lq-tile).
# ---------------------------------------------------------------------------
def _attn_kernel(q_ref, k_ref, v_ref, wq_ref, bq_ref, wp_ref, bp_ref, o_ref,
                 *, num_heads, q_dim, v_dim, compute_dtype):
    q = q_ref[0]                                   # (TQ, D)
    # Wide fused Q projection for all heads: one MXU matmul (N = H*Qd).
    qw = (jnp.dot(q, wq_ref[...], preferred_element_type=jnp.float32)
          + bq_ref[0]).astype(compute_dtype)       # (TQ, H*Qd)

    heads = []
    for h in range(num_heads):                     # static, small
        qh = qw[:, h * q_dim:(h + 1) * q_dim]      # lane-aligned iff q_dim%128==0
        kh = k_ref[0, h]                           # (Lk, Kd) head-major, pre-scaled
        vh = v_ref[0, h]                           # (Lk, Vd) head-major
        # Contract the last dims directly — no materialized K^T tile.
        s = jax.lax.dot_general(
            qh, kh, dimension_numbers=(((1,), (1,)), ((), ())),
            preferred_element_type=jnp.float32)    # (TQ, Lk) f32
        # Numerically-stable softmax, f32 stats, EUP reciprocal (~free slot).
        s = s - jnp.max(s, axis=-1, keepdims=True)
        p = jnp.exp(s)
        p = p * pl.reciprocal(jnp.sum(p, axis=-1, keepdims=True), approx=True)
        heads.append(jnp.dot(p.astype(compute_dtype), vh,
                             preferred_element_type=jnp.float32))  # (TQ, Vd) f32

    # Concatenate heads in-register, then ONE output-projection matmul with
    # contraction H*Vd; lane-dense (TQ, D) store, concat never hits HBM.
    cat = jnp.concatenate(heads, axis=-1).astype(compute_dtype)    # (TQ, H*Vd)
    out = jnp.dot(cat, wp_ref[...], preferred_element_type=jnp.float32) + bp_ref[0]
    o_ref[0] = out.astype(o_ref.dtype)


# ---------------------------------------------------------------------------
# Wrapper
# ---------------------------------------------------------------------------
def multihead_cross_attention(query, key, value, params, *,
                              block_q=None,
                              compute_dtype=jnp.bfloat16,
                              out_dtype=jnp.float32,
                              vmem_limit_bytes=64 * 1024 * 1024):
    B, Lq, D = query.shape
    Lk = key.shape[1]
    H, _, Qd = params["wq"].shape
    Kd = params["wk"].shape[2]
    Vd = params["wv"].shape[2]
    assert Qd == Kd, "Q_dim must equal K_dim for Q @ K^T"

    # Fuse per-head weights into single wide matrices: x @ w_f gives
    # [head0 | head1 | ...] along the feature dim.  (In real use store them
    # pre-fused; here it is a one-time wrapper cost.)
    wq_f = jnp.transpose(params["wq"], (1, 0, 2)).reshape(D, H * Qd)
    wk_f = jnp.transpose(params["wk"], (1, 0, 2)).reshape(D, H * Kd)
    wv_f = jnp.transpose(params["wv"], (1, 0, 2)).reshape(D, H * Vd)
    bq_f = params["bq"].reshape(1, H * Qd).astype(jnp.float32)
    bk_f = params["bk"].reshape(1, H * Kd).astype(jnp.float32)
    bv_f = params["bv"].reshape(1, H * Vd).astype(jnp.float32)
    wp = params["w_proj"]                             # (H*Vd, D), head-major rows
    bp = params["b_proj"].reshape(1, D).astype(jnp.float32)

    # bf16 matmul operands by default (MXU-native, halves DMA/VMEM bytes);
    # accumulation stays f32 inside the kernels.
    query = query.astype(compute_dtype)
    key = key.astype(compute_dtype)
    value = value.astype(compute_dtype)
    wq_c = wq_f.astype(compute_dtype)
    wk_c = wk_f.astype(compute_dtype)
    wv_c = wv_f.astype(compute_dtype)
    wp_c = wp.astype(compute_dtype)

    # ---- Lq tiling: cdiv + pad so no rows are ever silently dropped. ----
    if block_q is None:
        block_q = 256                 # amortizes ~0.35us/step pipeline overhead
    block_q = min(block_q, Lq)
    block_q = ((block_q + 7) // 8) * 8          # sublane-align the tile
    n_q = pl.cdiv(Lq, block_q)
    Lq_pad = n_q * block_q
    if Lq_pad != Lq:
        query = jnp.pad(query, ((0, 0), (0, Lq_pad - Lq), (0, 0)))

    # ---- Lk tiling for the projection prologue (no padding: padded key rows
    #      would receive softmax weight). ----
    block_k = Lk
    for cand in (512, 256, 128):
        if Lk % cand == 0:
            block_k = cand
            break
    n_k = Lk // block_k

    scale = 1.0 / (float(Kd) ** 0.5)
    cparams = pltpu.CompilerParams(
        dimension_semantics=("parallel", "parallel"),
        vmem_limit_bytes=vmem_limit_bytes)   # shrink toward ~48 MiB on v7x

    # ------------------ Kernel 1: per-batch K/V projection ------------------
    kv_kernel = functools.partial(
        _kv_proj_kernel, num_heads=H, k_dim=Kd, v_dim=Vd, scale=scale,
        compute_dtype=compute_dtype)
    k_proj, v_proj = pl.pallas_call(
        kv_kernel,
        out_shape=(jax.ShapeDtypeStruct((B, H, Lk, Kd), compute_dtype),
                   jax.ShapeDtypeStruct((B, H, Lk, Vd), compute_dtype)),
        grid_spec=pltpu.PrefetchScalarGridSpec(
            num_scalar_prefetch=0,
            grid=(B, n_k),
            in_specs=[
                pl.BlockSpec((1, block_k, D), lambda b, j: (b, j, 0)),   # key
                pl.BlockSpec((1, block_k, D), lambda b, j: (b, j, 0)),   # value
                pl.BlockSpec((D, H * Kd),     lambda b, j: (0, 0)),      # Wk fused
                pl.BlockSpec((1, H * Kd),     lambda b, j: (0, 0)),      # bk
                pl.BlockSpec((D, H * Vd),     lambda b, j: (0, 0)),      # Wv fused
                pl.BlockSpec((1, H * Vd),     lambda b, j: (0, 0)),      # bv
            ],
            out_specs=[
                pl.BlockSpec((1, H, block_k, Kd), lambda b, j: (b, 0, j, 0)),
                pl.BlockSpec((1, H, block_k, Vd), lambda b, j: (b, 0, j, 0)),
            ]),
        compiler_params=cparams,
    )(key, value, wk_c, bk_f, wv_c, bv_f)

    # -------------- Kernel 2: attention + fused output projection -----------
    attn_kernel = functools.partial(
        _attn_kernel, num_heads=H, q_dim=Qd, v_dim=Vd,
        compute_dtype=compute_dtype)
    out = pl.pallas_call(
        attn_kernel,
        out_shape=jax.ShapeDtypeStruct((B, Lq_pad, D), out_dtype),
        grid_spec=pltpu.PrefetchScalarGridSpec(
            num_scalar_prefetch=0,
            grid=(B, n_q),
            in_specs=[
                pl.BlockSpec((1, block_q, D), lambda b, i: (b, i, 0)),     # query
                pl.BlockSpec((1, H, Lk, Kd),  lambda b, i: (b, 0, 0, 0)),  # K_proj
                pl.BlockSpec((1, H, Lk, Vd),  lambda b, i: (b, 0, 0, 0)),  # V_proj
                pl.BlockSpec((D, H * Qd),     lambda b, i: (0, 0)),        # Wq fused
                pl.BlockSpec((1, H * Qd),     lambda b, i: (0, 0)),        # bq
                pl.BlockSpec((H * Vd, D),     lambda b, i: (0, 0)),        # W_proj
                pl.BlockSpec((1, D),          lambda b, i: (0, 0)),        # b_proj
            ],
            out_specs=pl.BlockSpec((1, block_q, D), lambda b, i: (b, i, 0)),
        ),
        compiler_params=cparams,
    )(query, k_proj, v_proj, wq_c, bq_f, wp_c, bp)

    if Lq_pad != Lq:
        out = out[:, :Lq]
    return out


# ---------------------------------------------------------------------------
# Parameter init mirroring the PyTorch module's per-head nn.Linear layers.
# ---------------------------------------------------------------------------
def init_params(key, num_heads, model_dim, q_dim, k_dim, v_dim):
    ks = jax.random.split(key, 2)

    def lin(k, fan_in, fan_out):
        bound = 1.0 / (fan_in ** 0.5)
        kw, kb = jax.random.split(k)
        w = jax.random.uniform(kw, (fan_in, fan_out), jnp.float32, -bound, bound)
        b = jax.random.uniform(kb, (fan_out,), jnp.float32, -bound, bound)
        return w, b

    wq, bq, wk, bk, wv, bv = [], [], [], [], [], []
    for hk in jax.random.split(ks[0], num_heads):
        k1, k2, k3 = jax.random.split(hk, 3)
        w, b = lin(k1, model_dim, q_dim); wq.append(w); bq.append(b)
        w, b = lin(k2, model_dim, k_dim); wk.append(w); bk.append(b)
        w, b = lin(k3, model_dim, v_dim); wv.append(w); bv.append(b)

    w_proj, b_proj = lin(ks[1], num_heads * v_dim, model_dim)
    return {
        "wq": jnp.stack(wq), "bq": jnp.stack(bq),
        "wk": jnp.stack(wk), "bk": jnp.stack(bk),
        "wv": jnp.stack(wv), "bv": jnp.stack(bv),
        "w_proj": w_proj, "b_proj": b_proj,
    }


def _reference(query, key, value, params):
    """Plain-JAX reference mirroring the PyTorch forward."""
    H = params["wq"].shape[0]
    Kd = params["wk"].shape[2]
    heads = []
    for h in range(H):
        Q = query @ params["wq"][h] + params["bq"][h]
        K = key @ params["wk"][h] + params["bk"][h]
        V = value @ params["wv"][h] + params["bv"][h]
        s = jnp.einsum("bqd,bkd->bqk", Q, K) / (Kd ** 0.5)
        p = jax.nn.softmax(s, axis=-1)
        heads.append(jnp.einsum("bqk,bkd->bqd", p, V))
    cat = jnp.concatenate(heads, axis=-1)
    return cat @ params["w_proj"] + params["b_proj"]


if __name__ == "__main__":
    B, Lq, Lk = 2, 8, 8
    num_heads, model_dim = 2, 32
    Q_dim = K_dim = 16          # Q_dim must equal K_dim for Q @ K^T
    V_dim = 16

    root = jax.random.PRNGKey(0)
    k_q, k_k, k_v, k_p = jax.random.split(root, 4)
    query = jax.random.normal(k_q, (B, Lq, model_dim), jnp.float32)
    key = jax.random.normal(k_k, (B, Lk, model_dim), jnp.float32)
    value = jax.random.normal(k_v, (B, Lk, model_dim), jnp.float32)
    params = init_params(k_p, num_heads, model_dim, Q_dim, K_dim, V_dim)

    ref = _reference(query, key, value, params)

    # Default path: bf16 matmul operands, f32 accumulation / softmax stats.
    out_bf16 = jax.block_until_ready(
        multihead_cross_attention(query, key, value, params))
    assert out_bf16.shape == (B, Lq, model_dim)
    assert jnp.allclose(out_bf16, ref, atol=8e-2, rtol=8e-2), "bf16 mismatch"

    # f32 compute path: tight check (approx reciprocal leaves ~1e-3 residual).
    out_f32 = jax.block_until_ready(
        multihead_cross_attention(query, key, value, params,
                                  compute_dtype=jnp.float32))
    assert jnp.allclose(out_f32, ref, atol=3e-3, rtol=3e-3), "f32 mismatch"

    print("KERNEL_OK")
</pallas_src>

<mosaic_0001>
module attributes {stable_mosaic.version = 11 : i64} {
  func.func @_kv_proj_kernel(%arg0: i32, %arg1: i32, %arg2: memref<1x8x32xbf16, #tpu.memory_space<vmem>>, %arg3: memref<1x8x32xbf16, #tpu.memory_space<vmem>>, %arg4: memref<32x32xbf16, #tpu.memory_space<vmem>>, %arg5: memref<1x32xf32, #tpu.memory_space<vmem>>, %arg6: memref<32x32xbf16, #tpu.memory_space<vmem>>, %arg7: memref<1x32xf32, #tpu.memory_space<vmem>>, %arg8: memref<1x2x8x16xbf16, #tpu.memory_space<vmem>>, %arg9: memref<1x2x8x16xbf16, #tpu.memory_space<vmem>>) attributes {dimension_semantics = [#tpu.dimension_semantics<parallel>, #tpu.dimension_semantics<parallel>], iteration_bounds = array<i64: 2, 1>, scalar_prefetch = 0 : i64, scratch_operands = 0 : i64, tpu.core_type = #tpu.core_type<tc>, window_params = [{transform_indices = @transform_0, window_bounds = array<i64: 1, 8, 32>}, {transform_indices = @transform_1, window_bounds = array<i64: 1, 8, 32>}, {pipeline_mode = #tpu.pipeline_mode<synchronous>, transform_indices = @transform_2, window_bounds = array<i64: 32, 32>}, {pipeline_mode = #tpu.pipeline_mode<synchronous>, transform_indices = @transform_3, window_bounds = array<i64: 1, 32>}, {pipeline_mode = #tpu.pipeline_mode<synchronous>, transform_indices = @transform_4, window_bounds = array<i64: 32, 32>}, {pipeline_mode = #tpu.pipeline_mode<synchronous>, transform_indices = @transform_5, window_bounds = array<i64: 1, 32>}, {transform_indices = @transform_6, window_bounds = array<i64: 1, 2, 8, 16>}, {transform_indices = @transform_7, window_bounds = array<i64: 1, 2, 8, 16>}]} {
    %c0 = arith.constant 0 : index
    %c0_0 = arith.constant 0 : index
    %c0_1 = arith.constant 0 : index
    %0 = vector.load %arg2[%c0, %c0_0, %c0_1] : memref<1x8x32xbf16, #tpu.memory_space<vmem>>, vector<1x8x32xbf16>
    %1 = vector.shape_cast %0 : vector<1x8x32xbf16> to vector<8x32xbf16>
    %c0_2 = arith.constant 0 : index
    %c0_3 = arith.constant 0 : index
    %c0_4 = arith.constant 0 : index
    %2 = vector.load %arg3[%c0_2, %c0_3, %c0_4] : memref<1x8x32xbf16, #tpu.memory_space<vmem>>, vector<1x8x32xbf16>
    %3 = vector.shape_cast %2 : vector<1x8x32xbf16> to vector<8x32xbf16>
    %c0_5 = arith.constant 0 : index
    %c0_6 = arith.constant 0 : index
    %4 = vector.load %arg4[%c0_5, %c0_6] : memref<32x32xbf16, #tpu.memory_space<vmem>>, vector<32x32xbf16>
    %cst = arith.constant dense<0.000000e+00> : vector<8x32xf32>
    %5 = tpu.matmul %1, %4, %cst {dimension_numbers = #tpu.dot_dimension_numbers<[1], [0], [0], [1], [0, 0, 1, 1], [], []>} : vector<8x32xbf16>, vector<32x32xbf16>, vector<8x32xf32> -> vector<8x32xf32>
    %c0_7 = arith.constant 0 : index
    %c0_8 = arith.constant 0 : index
    %6 = vector.load %arg5[%c0_7, %c0_8] : memref<1x32xf32, #tpu.memory_space<vmem>>, vector<1x32xf32>
    %7 = vector.shape_cast %6 : vector<1x32xf32> to vector<32xf32>
    %8 = vector.shape_cast %7 : vector<32xf32> to vector<1x32xf32>
    %9 = vector.broadcast %8 : vector<1x32xf32> to vector<8x32xf32>
    %10 = arith.addf %5, %9 : vector<8x32xf32>
    %cst_9 = arith.constant 2.500000e-01 : f32
    %11 = vector.broadcast %cst_9 : f32 to vector<8x32xf32>
    %12 = arith.mulf %10, %11 : vector<8x32xf32>
    %13 = arith.truncf %12 : vector<8x32xf32> to vector<8x32xbf16>
    %c0_10 = arith.constant 0 : index
    %c0_11 = arith.constant 0 : index
    %14 = vector.load %arg6[%c0_10, %c0_11] : memref<32x32xbf16, #tpu.memory_space<vmem>>, vector<32x32xbf16>
    %cst_12 = arith.constant dense<0.000000e+00> : vector<8x32xf32>
    %15 = tpu.matmul %3, %14, %cst_12 {dimension_numbers = #tpu.dot_dimension_numbers<[1], [0], [0], [1], [0, 0, 1, 1], [], []>} : vector<8x32xbf16>, vector<32x32xbf16>, vector<8x32xf32> -> vector<8x32xf32>
    %c0_13 = arith.constant 0 : index
    %c0_14 = arith.constant 0 : index
    %16 = vector.load %arg7[%c0_13, %c0_14] : memref<1x32xf32, #tpu.memory_space<vmem>>, vector<1x32xf32>
    %17 = vector.shape_cast %16 : vector<1x32xf32> to vector<32xf32>
    %18 = vector.shape_cast %17 : vector<32xf32> to vector<1x32xf32>
    %19 = vector.broadcast %18 : vector<1x32xf32> to vector<8x32xf32>
    %20 = arith.addf %15, %19 : vector<8x32xf32>
    %21 = arith.truncf %20 : vector<8x32xf32> to vector<8x32xbf16>
    %22 = vector.extract_strided_slice %13 {offsets = [0, 0], sizes = [8, 16], strides = [1, 1]} : vector<8x32xbf16> to vector<8x16xbf16>
    %c0_15 = arith.constant 0 : index
    %c0_16 = arith.constant 0 : index
    %c0_17 = arith.constant 0 : index
    %c0_18 = arith.constant 0 : index
    %23 = vector.load %arg8[%c0_15, %c0_16, %c0_17, %c0_18] : memref<1x2x8x16xbf16, #tpu.memory_space<vmem>>, vector<1x1x8x16xbf16>
    %24 = vector.shape_cast %23 : vector<1x1x8x16xbf16> to vector<8x16xbf16>
    %25 = vector.shape_cast %22 : vector<8x16xbf16> to vector<1x1x8x16xbf16>
    tpu.vector_store %arg8[%c0_15, %c0_16, %c0_17, %c0_18], %25 {strides = array<i32>} : memref<1x2x8x16xbf16, #tpu.memory_space<vmem>>, vector<1x1x8x16xbf16>,
    %26 = vector.extract_strided_slice %21 {offsets = [0, 0], sizes = [8, 16], strides = [1, 1]} : vector<8x32xbf16> to vector<8x16xbf16>
    %c0_19 = arith.constant 0 : index
    %c0_20 = arith.constant 0 : index
    %c0_21 = arith.constant 0 : index
    %c0_22 = arith.constant 0 : index
    %27 = vector.load %arg9[%c0_19, %c0_20, %c0_21, %c0_22] : memref<1x2x8x16xbf16, #tpu.memory_space<vmem>>, vector<1x1x8x16xbf16>
    %28 = vector.shape_cast %27 : vector<1x1x8x16xbf16> to vector<8x16xbf16>
    %29 = vector.shape_cast %26 : vector<8x16xbf16> to vector<1x1x8x16xbf16>
    tpu.vector_store %arg9[%c0_19, %c0_20, %c0_21, %c0_22], %29 {strides = array<i32>} : memref<1x2x8x16xbf16, #tpu.memory_space<vmem>>, vector<1x1x8x16xbf16>,
    %30 = vector.extract_strided_slice %13 {offsets = [0, 16], sizes = [8, 16], strides = [1, 1]} : vector<8x32xbf16> to vector<8x16xbf16>
    %c0_23 = arith.constant 0 : index
    %c1 = arith.constant 1 : index
    %c0_24 = arith.constant 0 : index
    %c0_25 = arith.constant 0 : index
    %31 = vector.load %arg8[%c0_23, %c1, %c0_24, %c0_25] : memref<1x2x8x16xbf16, #tpu.memory_space<vmem>>, vector<1x1x8x16xbf16>
    %32 = vector.shape_cast %31 : vector<1x1x8x16xbf16> to vector<8x16xbf16>
    %33 = vector.shape_cast %30 : vector<8x16xbf16> to vector<1x1x8x16xbf16>
    tpu.vector_store %arg8[%c0_23, %c1, %c0_24, %c0_25], %33 {strides = array<i32>} : memref<1x2x8x16xbf16, #tpu.memory_space<vmem>>, vector<1x1x8x16xbf16>,
    %34 = vector.extract_strided_slice %21 {offsets = [0, 16], sizes = [8, 16], strides = [1, 1]} : vector<8x32xbf16> to vector<8x16xbf16>
    %c0_26 = arith.constant 0 : index
    %c1_27 = arith.constant 1 : index
    %c0_28 = arith.constant 0 : index
    %c0_29 = arith.constant 0 : index
    %35 = vector.load %arg9[%c0_26, %c1_27, %c0_28, %c0_29] : memref<1x2x8x16xbf16, #tpu.memory_space<vmem>>, vector<1x1x8x16xbf16>
    %36 = vector.shape_cast %35 : vector<1x1x8x16xbf16> to vector<8x16xbf16>
    %37 = vector.shape_cast %34 : vector<8x16xbf16> to vector<1x1x8x16xbf16>
    tpu.vector_store %arg9[%c0_26, %c1_27, %c0_28, %c0_29], %37 {strides = array<i32>} : memref<1x2x8x16xbf16, #tpu.memory_space<vmem>>, vector<1x1x8x16xbf16>,
    return
  }
  func.func @transform_0(%arg0: i32, %arg1: i32) -> (i32, i32, i32) {
    %c0_i32 = arith.constant 0 : i32
    %c0_i32_0 = arith.constant 0 : i32
    return %arg0, %arg1, %c0_i32 : i32, i32, i32
  }
  func.func @transform_1(%arg0: i32, %arg1: i32) -> (i32, i32, i32) {
    %c0_i32 = arith.constant 0 : i32
    %c0_i32_0 = arith.constant 0 : i32
    return %arg0, %arg1, %c0_i32 : i32, i32, i32
  }
  func.func @transform_2(%arg0: i32, %arg1: i32) -> (i32, i32) {
    %c0_i32 = arith.constant 0 : i32
    %c0_i32_0 = arith.constant 0 : i32
    %c0_i32_1 = arith.constant 0 : i32
    return %c0_i32, %c0_i32_0 : i32, i32
  }
  func.func @transform_3(%arg0: i32, %arg1: i32) -> (i32, i32) {
    %c0_i32 = arith.constant 0 : i32
    %c0_i32_0 = arith.constant 0 : i32
    %c0_i32_1 = arith.constant 0 : i32
    return %c0_i32, %c0_i32_0 : i32, i32
  }
  func.func @transform_4(%arg0: i32, %arg1: i32) -> (i32, i32) {
    %c0_i32 = arith.constant 0 : i32
    %c0_i32_0 = arith.constant 0 : i32
    %c0_i32_1 = arith.constant 0 : i32
    return %c0_i32, %c0_i32_0 : i32, i32
  }
  func.func @transform_5(%arg0: i32, %arg1: i32) -> (i32, i32) {
    %c0_i32 = arith.constant 0 : i32
    %c0_i32_0 = arith.constant 0 : i32
    %c0_i32_1 = arith.constant 0 : i32
    return %c0_i32, %c0_i32_0 : i32, i32
  }
  func.func @transform_6(%arg0: i32, %arg1: i32) -> (i32, i32, i32, i32) {
    %c0_i32 = arith.constant 0 : i32
    %c0_i32_0 = arith.constant 0 : i32
    %c0_i32_1 = arith.constant 0 : i32
    return %arg0, %c0_i32, %arg1, %c0_i32_0 : i32, i32, i32, i32
  }
  func.func @transform_7(%arg0: i32, %arg1: i32) -> (i32, i32, i32, i32) {
    %c0_i32 = arith.constant 0 : i32
    %c0_i32_0 = arith.constant 0 : i32
    %c0_i32_1 = arith.constant 0 : i32
    return %arg0, %c0_i32, %arg1, %c0_i32_0 : i32, i32, i32, i32
  }
}

</mosaic_0001>

<llo_original>
// kernel: tpu_custom_call.1
$region0: #{tpu_custom_call.1}
  #allocation0 [shape = 'u32[]', space=smem, size = 0x4, offset = 0x4, fixed_abs, tag = 'smem constant byte address 0x4 - core index']
  #allocation1 [shape = 'u32[72,128]{1,0:T(1,128)}', space=vmem, size = 0x9000, scoped, tag = 'internal scratch']
  %s0 = inlined_call_operand.hbm [shape: bf16[2,8,32], index: 0, kind: input, shape index: {}]
  %s1 = inlined_call_operand.hbm [shape: bf16[2,8,32], index: 1, kind: input, shape index: {}]
  %s2 = inlined_call_operand.hbm [shape: bf16[32,32], index: 2, kind: input, shape index: {}]
  %s3 = inlined_call_operand.vmem [shape: f32[1,32], index: 3, kind: input, shape index: {}]
  %s4 = inlined_call_operand.hbm [shape: bf16[32,32], index: 4, kind: input, shape index: {}]
  %s5 = inlined_call_operand.vmem [shape: f32[1,32], index: 5, kind: input, shape index: {}]
  %s6 = inlined_call_operand.hbm [shape: bf16[2,2,8,16], index: 6, kind: output, shape index: {0}]
  %s7 = inlined_call_operand.hbm [shape: bf16[2,2,8,16], index: 7, kind: output, shape index: {1}]
  %8 = xla_tuple %s6, %s7
  %s9 = sld [smem:[#allocation0]]
  $region81: #{tpu_custom_call.1} parent=0
    _
  %s11 = ssub.s32 1, %s9
  %s12 = scalar_select 0, %s11, %s9
  $region1: #{tpu_custom_call.1} parent=0
    #allocation2 [shape = 'u8[4096]{0}', space=vmem, size = 0x1000, scoped, tag = 'input window, operand 0']
    #allocation3 [shape = 's32[2]{0}', space=sflag, size = 0x8, scoped, tag = 'scoped memory for tpu_custom_call.1']
    #allocation4 [shape = 's32[2]{0}', space=sflag, size = 0x8, scoped, tag = 'scoped memory for tpu_custom_call.1']
    #allocation5 [shape = 'u8[4096]{0}', space=vmem, size = 0x1000, scoped, tag = 'input window, operand 1']
    #allocation6 [shape = 's32[2]{0}', space=sflag, size = 0x8, scoped, tag = 'scoped memory for tpu_custom_call.1']
    #allocation7 [shape = 'u8[8192]{0}', space=vmem, size = 0x2000, scoped, tag = 'input window, operand 2, single buffered']
    #allocation8 [shape = 'u8[8192]{0}', space=vmem, size = 0x2000, scoped, tag = 'input window, operand 4, single buffered']
    #allocation9 [shape = 's32[1]{0}', space=sflag, size = 0x4, scoped, tag = 'scoped memory for tpu_custom_call.1']
    #allocation10 [shape = 'u8[8192]{0}', space=vmem, size = 0x2000, scoped, tag = 'output window, operand 0']
    #allocation11 [shape = 'u8[8192]{0}', space=vmem, size = 0x2000, scoped, tag = 'output window, operand 1']
    #allocation12 [shape = 's32[2]{0}', space=sflag, size = 0x8, scoped, tag = 'scoped memory for tpu_custom_call.1']
    %13 = vsyncpa [#allocation3], 0
    %s14 = scalar_lea.sflag [#allocation3], 1
    %15 = vsyncpa %s14, 0
    %16 = vsyncpa [#allocation6], 0
    %s17 = scalar_lea.sflag [#allocation6], 1
    %18 = vsyncpa %s17, 0
    %19 = vsyncpa [#allocation9], 0
    %20 = vsyncpa [#allocation4], 0
    %s21 = scalar_lea.sflag [#allocation4], 1
    %22 = vsyncpa %s21, 0
    %23 = vsyncpa [#allocation12], 0
    %s24 = scalar_lea.sflag [#allocation12], 1
    %25 = vsyncpa %s24, 0
    loop: start=0, step=1, limit=4
    $region2: #{tpu_custom_call.1} parent=1 // loop_pre_header
      _
    $region3: #{tpu_custom_call.1} parent=1 // loop_header
      %s27 = sphi 0, %s31
      %p28 = scmp.ge.s32.totalorder %s27, 4
      %s34 = sphi 0, %s46
      %s35 = sphi 0, %s42
      %s36 = sphi 0, %s34
      %s37 = sphi 0, %s35
      %s38 = sphi 0, %s36
      %s39 = sphi 0, %s37
      %s51 = sphi 0, %s53
      %s54 = sphi 0, %s51
      %s55 = sphi 0, %s54
      %s71 = sphi 0, %s55
      %s79 = sphi 0, %s81
      %s82 = sphi 0, %s79
      %s83 = sphi 0, %s82
      %s99 = sphi 0, %s83
      %s103 = sphi 0, %s103
      %s105 = sphi 0, %s103
      %s106 = sphi 0, %s105
      %s120 = sphi 0, %s106
      %s124 = sphi 0, %s124
      %s126 = sphi 0, %s124
      %s127 = sphi 0, %s126
      %s141 = sphi 0, %s127
      %s145 = sphi 0, %s145
      %s147 = sphi 0, %s145
      %s148 = sphi 0, %s147
      %s162 = sphi 0, %s148
      %s166 = sphi 0, %s166
      %s168 = sphi 0, %s166
      %s169 = sphi 0, %s168
      %s183 = sphi 0, %s169
      %s191 = sphi 0, %s193
      %s194 = sphi 0, %s191
      %s195 = sphi 0, %s194
      %s211 = sphi 0, %s195
      %s219 = sphi 0, %s221
      %s222 = sphi 0, %s219
      %s223 = sphi 0, %s222
      %s239 = sphi 0, %s223
    $region4: #{tpu_custom_call.1} parent=1 // loop_header_branch
      %30 = sbr.rel (%p28) target = $region8
    $region5: #{tpu_custom_call.1} parent=1 // loop_body
      %s32 = ssub.s32 %s27, 1
      %s33 = ssub.s32 %s27, 2
      %s40 = sadd.s32 1, %s35
      %p41 = scmp.ge.s32.totalorder %s40, 1
      %s42 = scalar_select %p41, 0, %s40
      %s43 = sadd.s32 1, %s34
      %s44 = scalar_select %p41, %s43, %s34
      %p45 = scmp.ge.s32.totalorder %s44, 2
      %s46 = scalar_select %p45, 0, %s44
      %s47 = ssub.s32 %s34, %s46
      %s48 = ssub.s32 %s35, %s42
      %s49 = sor.u32 %s47, %s48
      %p50 = scmp.eq.s32.totalorder %s49, 0
      %s52 = sadd.s32 %s51, 1
      %s53 = scalar_select %p50, %s51, %s52
      %p56 = pneg %p50
      %p57 = scmp.eq.s32.totalorder %s27, 1
      %p58 = por %p56, %p57
      %p59 = scmp.ne.s32.totalorder %s51, %s54
      %p60 = scmp.eq.s32.totalorder %s27, 0
      %p61 = por %p59, %p60
      %p62 = scmp.ne.s32.totalorder %s51, %s54
      %p63 = scmp.eq.s32.totalorder %s32, 1
      %p64 = por %p62, %p63
      %p65 = scmp.ne.s32.totalorder %s54, %s55
      %p66 = scmp.eq.s32.totalorder %s32, 0
      %p67 = por %p65, %p66
      %p68 = scmp.ne.s32.totalorder %s54, %s55
      %p69 = scmp.eq.s32.totalorder %s33, 1
      %p70 = por %p68, %p69
      %p72 = scmp.ne.s32.totalorder %s55, %s71
      %p73 = scmp.eq.s32.totalorder %s33, 0
      %p74 = por %p72, %p73
      %s75 = ssub.s32 %s34, %s46
      %s76 = ssub.s32 %s35, %s42
      %s77 = sor.u32 %s75, %s76
      %p78 = scmp.eq.s32.totalorder %s77, 0
      %s80 = sadd.s32 %s79, 1
      %s81 = scalar_select %p78, %s79, %s80
      %p84 = pneg %p78
      %p85 = scmp.eq.s32.totalorder %s27, 1
      %p86 = por %p84, %p85
      %p87 = scmp.ne.s32.totalorder %s79, %s82
      %p88 = scmp.eq.s32.totalorder %s27, 0
      %p89 = por %p87, %p88
      %p90 = scmp.ne.s32.totalorder %s79, %s82
      %p91 = scmp.eq.s32.totalorder %s32, 1
      %p92 = por %p90, %p91
      %p93 = scmp.ne.s32.totalorder %s82, %s83
      %p94 = scmp.eq.s32.totalorder %s32, 0
      %p95 = por %p93, %p94
      %p96 = scmp.ne.s32.totalorder %s82, %s83
      %p97 = scmp.eq.s32.totalorder %s33, 1
      %p98 = por %p96, %p97
      %p100 = scmp.ne.s32.totalorder %s83, %s99
      %p101 = scmp.eq.s32.totalorder %s33, 0
      %p102 = por %p100, %p101
      %s104 = sadd.s32 %s103, 1
      %p107 = scmp.eq.s32.totalorder %s27, 1
      %p108 = scmp.ne.s32.totalorder %s103, %s105
      %p109 = scmp.eq.s32.totalorder %s27, 0
      %p110 = por %p108, %p109
      %p111 = scmp.ne.s32.totalorder %s103, %s105
      %p112 = scmp.eq.s32.totalorder %s32, 1
      %p113 = por %p111, %p112
      %p114 = scmp.ne.s32.totalorder %s105, %s106
      %p115 = scmp.eq.s32.totalorder %s32, 0
      %p116 = por %p114, %p115
      %p117 = scmp.ne.s32.totalorder %s105, %s106
      %p118 = scmp.eq.s32.totalorder %s33, 1
      %p119 = por %p117, %p118
      %p121 = scmp.ne.s32.totalorder %s106, %s120
      %p122 = scmp.eq.s32.totalorder %s33, 0
      %p123 = por %p121, %p122
      %s125 = sadd.s32 %s124, 1
      %p128 = scmp.eq.s32.totalorder %s27, 1
      %p129 = scmp.ne.s32.totalorder %s124, %s126
      %p130 = scmp.eq.s32.totalorder %s27, 0
      %p131 = por %p129, %p130
      %p132 = scmp.ne.s32.totalorder %s124, %s126
      %p133 = scmp.eq.s32.totalorder %s32, 1
      %p134 = por %p132, %p133
      %p135 = scmp.ne.s32.totalorder %s126, %s127
      %p136 = scmp.eq.s32.totalorder %s32, 0
      %p137 = por %p135, %p136
      %p138 = scmp.ne.s32.totalorder %s126, %s127
      %p139 = scmp.eq.s32.totalorder %s33, 1
      %p140 = por %p138, %p139
      %p142 = scmp.ne.s32.totalorder %s127, %s141
      %p143 = scmp.eq.s32.totalorder %s33, 0
      %p144 = por %p142, %p143
      %s146 = sadd.s32 %s145, 1
      %p149 = scmp.eq.s32.totalorder %s27, 1
      %p150 = scmp.ne.s32.totalorder %s145, %s147
      %p151 = scmp.eq.s32.totalorder %s27, 0
      %p152 = por %p150, %p151
      %p153 = scmp.ne.s32.totalorder %s145, %s147
      %p154 = scmp.eq.s32.totalorder %s32, 1
      %p155 = por %p153, %p154
      %p156 = scmp.ne.s32.totalorder %s147, %s148
      %p157 = scmp.eq.s32.totalorder %s32, 0
      %p158 = por %p156, %p157
      %p159 = scmp.ne.s32.totalorder %s147, %s148
      %p160 = scmp.eq.s32.totalorder %s33, 1
      %p161 = por %p159, %p160
      %p163 = scmp.ne.s32.totalorder %s148, %s162
      %p164 = scmp.eq.s32.totalorder %s33, 0
      %p165 = por %p163, %p164
      %s167 = sadd.s32 %s166, 1
      %p170 = scmp.eq.s32.totalorder %s27, 1
      %p171 = scmp.ne.s32.totalorder %s166, %s168
      %p172 = scmp.eq.s32.totalorder %s27, 0
      %p173 = por %p171, %p172
      %p174 = scmp.ne.s32.totalorder %s166, %s168
      %p175 = scmp.eq.s32.totalorder %s32, 1
      %p176 = por %p174, %p175
      %p177 = scmp.ne.s32.totalorder %s168, %s169
      %p178 = scmp.eq.s32.totalorder %s32, 0
      %p179 = por %p177, %p178
      %p180 = scmp.ne.s32.totalorder %s168, %s169
      %p181 = scmp.eq.s32.totalorder %s33, 1
      %p182 = por %p180, %p181
      %p184 = scmp.ne.s32.totalorder %s169, %s183
      %p185 = scmp.eq.s32.totalorder %s33, 0
      %p186 = por %p184, %p185
      %s187 = ssub.s32 %s34, %s46
      %s188 = ssub.s32 %s35, %s42
      %s189 = sor.u32 %s187, %s188
      %p190 = scmp.eq.s32.totalorder %s189, 0
      %s192 = sadd.s32 %s191, 1
      %s193 = scalar_select %p190, %s191, %s192
      %p196 = pneg %p190
      %p197 = scmp.eq.s32.totalorder %s27, 1
      %p198 = por %p196, %p197
      %p199 = scmp.ne.s32.totalorder %s191, %s194
      %p200 = scmp.eq.s32.totalorder %s27, 0
      %p201 = por %p199, %p200
      %p202 = scmp.ne.s32.totalorder %s191, %s194
      %p203 = scmp.eq.s32.totalorder %s32, 1
      %p204 = por %p202, %p203
      %p205 = scmp.ne.s32.totalorder %s194, %s195
      %p206 = scmp.eq.s32.totalorder %s32, 0
      %p207 = por %p205, %p206
      %p208 = scmp.ne.s32.totalorder %s194, %s195
      %p209 = scmp.eq.s32.totalorder %s33, 1
      %p210 = por %p208, %p209
      %p212 = scmp.ne.s32.totalorder %s195, %s211
      %p213 = scmp.eq.s32.totalorder %s33, 0
      %p214 = por %p212, %p213
      %s215 = ssub.s32 %s34, %s46
      %s216 = ssub.s32 %s35, %s42
      %s217 = sor.u32 %s215, %s216
      %p218 = scmp.eq.s32.totalorder %s217, 0
      %s220 = sadd.s32 %s219, 1
      %s221 = scalar_select %p218, %s219, %s220
      %p224 = pneg %p218
      %p225 = scmp.eq.s32.totalorder %s27, 1
      %p226 = por %p224, %p225
      %p227 = scmp.ne.s32.totalorder %s219, %s222
      %p228 = scmp.eq.s32.totalorder %s27, 0
      %p229 = por %p227, %p228
      %p230 = scmp.ne.s32.totalorder %s219, %s222
      %p231 = scmp.eq.s32.totalorder %s32, 1
      %p232 = por %p230, %p231
      %p233 = scmp.ne.s32.totalorder %s222, %s223
      %p234 = scmp.eq.s32.totalorder %s32, 0
      %p235 = por %p233, %p234
      %p236 = scmp.ne.s32.totalorder %s222, %s223
      %p237 = scmp.eq.s32.totalorder %s33, 1
      %p238 = por %p236, %p237
      %p240 = scmp.ne.s32.totalorder %s223, %s239
      %p241 = scmp.eq.s32.totalorder %s33, 0
      %p242 = por %p240, %p241
      %p243 = scmp.le.s32.totalorder 1, %s27
      %p244 = scmp.lt.s32.totalorder %s27, 3
      %p245 = pnand %p243, %p244
      %p246 = pneg %p245
      // Predicated region
      $region9: #{tpu_custom_call.1} parent=5 // pred_check
        _
      $region10: #{tpu_custom_call.1} parent=5 // pred_check_branch
        %248 = sbr.rel (%p245) target = $region12
      $region11: #{tpu_custom_call.1} parent=5 // pred_region
        %s249 = ssub.s32 %s27, 1
        // Predicated region
        $region13: #{tpu_custom_call.1} parent=11 // pred_check
          %p250 = pneg %p116
        $region14: #{tpu_custom_call.1} parent=11 // pred_check_branch
          %252 = sbr.rel (%p250) target = $region16
        $region15: #{tpu_custom_call.1} parent=11 // pred_region
          %254 = vsyncadd [#allocation6], 0
          %s255 = sshll.u32 %s2, 4
          %s256 = int_to_ptr.hbm [resolvable:$true] %s255
          %s257 = sshll.u32 [#allocation7], 4
          %s258 = int_to_ptr.vmem [resolvable:$true] %s257
          %263 = dma.hbm_to_vmem [thread:$0]  %s256, 256, %s258, [#allocation6], 64, 64, 4
        $region16: #{tpu_custom_call.1} parent=11 // pred_fallthru
          _
        // Predicated region
        $region17: #{tpu_custom_call.1} parent=11 // pred_check
          %p264 = pneg %p137
        $region18: #{tpu_custom_call.1} parent=11 // pred_check_branch
          %266 = sbr.rel (%p264) target = $region20
        $region19: #{tpu_custom_call.1} parent=11 // pred_region
          _
        $region20: #{tpu_custom_call.1} parent=11 // pred_fallthru
          _
        // Predicated region
        $region21: #{tpu_custom_call.1} parent=11 // pred_check
          %p267 = pneg %p158
        $region22: #{tpu_custom_call.1} parent=11 // pred_check_branch
          %269 = sbr.rel (%p267) target = $region24
        $region23: #{tpu_custom_call.1} parent=11 // pred_region
          %271 = vsyncadd [#allocation9], 0
          %s272 = sshll.u32 %s4, 4
          %s273 = int_to_ptr.hbm [resolvable:$true] %s272
          %s274 = sshll.u32 [#allocation8], 4
          %s275 = int_to_ptr.vmem [resolvable:$true] %s274
          %280 = dma.hbm_to_vmem [thread:$0]  %s273, 256, %s275, [#allocation9], 64, 64, 4
        $region24: #{tpu_custom_call.1} parent=11 // pred_fallthru
          _
        // Predicated region
        $region25: #{tpu_custom_call.1} parent=11 // pred_check
          %p281 = pneg %p179
        $region26: #{tpu_custom_call.1} parent=11 // pred_check_branch
          %283 = sbr.rel (%p281) target = $region28
        $region27: #{tpu_custom_call.1} parent=11 // pred_region
          _
        $region28: #{tpu_custom_call.1} parent=11 // pred_fallthru
          _
      $region12: #{tpu_custom_call.1} parent=5 // pred_fallthru
        _
      %p284 = scmp.lt.s32.totalorder %s27, 2
      // Predicated region
      $region29: #{tpu_custom_call.1} parent=5 // pred_check
        %p285 = pneg %p284
      $region30: #{tpu_custom_call.1} parent=5 // pred_check_branch
        %287 = sbr.rel (%p285) target = $region32
      $region31: #{tpu_custom_call.1} parent=5 // pred_region
        // Predicated region
        $region33: #{tpu_custom_call.1} parent=31 // pred_check
          %p288 = pneg %p61
        $region34: #{tpu_custom_call.1} parent=31 // pred_check_branch
          %290 = sbr.rel (%p288) target = $region36
        $region35: #{tpu_custom_call.1} parent=31 // pred_region
          %s291 = sand.u32 %s51, 1
          %s292 = scalar_lea.sflag [#allocation3], %s291
          %s293 = sand.u32 %s51, 1
          %s294 = smul.addr %s293, 4
          %s295 = scalar_lea.vmem [#allocation2], %s294
          %297 = vsyncadd %s292, 0
          %s298 = sadd.s32 %s35, %s34
          %s299 = smul.addr %s298, 4
          %s300 = scalar_lea.hbm %s0, %s299
          %s302 = sshll.u32 %s300, 4
          %s303 = int_to_ptr.hbm [resolvable:$true] %s302
          %s304 = sshll.u32 %s295, 4
          %s305 = int_to_ptr.vmem [resolvable:$true] %s304
          %307 = dma.hbm_to_vmem [thread:$0]  %s303, 64, %s305, %s292
        $region36: #{tpu_custom_call.1} parent=31 // pred_fallthru
          _
        // Predicated region
        $region37: #{tpu_custom_call.1} parent=31 // pred_check
          %p308 = pneg %p89
        $region38: #{tpu_custom_call.1} parent=31 // pred_check_branch
          %310 = sbr.rel (%p308) target = $region40
        $region39: #{tpu_custom_call.1} parent=31 // pred_region
          %s311 = sand.u32 %s27, 1
          %s312 = scalar_lea.sflag [#allocation6], %s311
          %s313 = sand.u32 %s79, 1
          %s314 = smul.addr %s313, 4
          %s315 = scalar_lea.vmem [#allocation5], %s314
          %317 = vsyncadd %s312, 0
          %s318 = sadd.s32 %s35, %s34
          %s319 = smul.addr %s318, 4
          %s320 = scalar_lea.hbm %s1, %s319
          %s322 = sshll.u32 %s320, 4
          %s323 = int_to_ptr.hbm [resolvable:$true] %s322
          %s324 = sshll.u32 %s315, 4
          %s325 = int_to_ptr.vmem [resolvable:$true] %s324
          %327 = dma.hbm_to_vmem [thread:$0]  %s323, 64, %s325, %s312
        $region40: #{tpu_custom_call.1} parent=31 // pred_fallthru
          _
      $region32: #{tpu_custom_call.1} parent=5 // pred_fallthru
        _
      %p328 = scmp.le.s32.totalorder 1, %s27
      %p329 = scmp.lt.s32.totalorder %s27, 3
      %p330 = pnand %p328, %p329
      %p331 = pneg %p330
      // Predicated region
      $region41: #{tpu_custom_call.1} parent=5 // pred_check
        _
      $region42: #{tpu_custom_call.1} parent=5 // pred_check_branch
        %333 = sbr.rel (%p330) target = $region44
      $region43: #{tpu_custom_call.1} parent=5 // pred_region
        %s334 = ssub.s32 %s27, 1
        %s335 = sand.u32 %s54, 1
        %s336 = scalar_lea.sflag [#allocation3], %s335
        %s337 = sand.u32 %s54, 1
        %s338 = smul.addr %s337, 4
        %s339 = scalar_lea.vmem [#allocation2], %s338
        // Predicated region
        $region45: #{tpu_custom_call.1} parent=43 // pred_check
          %p340 = pneg %p67
        $region46: #{tpu_custom_call.1} parent=43 // pred_check_branch
          %342 = sbr.rel (%p340) target = $region48
        $region47: #{tpu_custom_call.1} parent=43 // pred_region
          %344 = dma.done %s336, 64
        $region48: #{tpu_custom_call.1} parent=43 // pred_fallthru
          _
        %s345 = sand.u32 %s32, 1
        %s346 = scalar_lea.sflag [#allocation6], %s345
        %s347 = sand.u32 %s82, 1
        %s348 = smul.addr %s347, 4
        %s349 = scalar_lea.vmem [#allocation5], %s348
        // Predicated region
        $region49: #{tpu_custom_call.1} parent=43 // pred_check
          %p350 = pneg %p95
        $region50: #{tpu_custom_call.1} parent=43 // pred_check_branch
          %352 = sbr.rel (%p350) target = $region52
        $region51: #{tpu_custom_call.1} parent=43 // pred_region
          %354 = dma.done %s346, 64
        $region52: #{tpu_custom_call.1} parent=43 // pred_fallthru
          _
        // Predicated region
        $region53: #{tpu_custom_call.1} parent=43 // pred_check
          %p355 = pneg %p116
        $region54: #{tpu_custom_call.1} parent=43 // pred_check_branch
          %357 = sbr.rel (%p355) target = $region56
        $region55: #{tpu_custom_call.1} parent=43 // pred_region
          %359 = dma.done [#allocation6], 256
        $region56: #{tpu_custom_call.1} parent=43 // pred_fallthru
          _
        // Predicated region
        $region57: #{tpu_custom_call.1} parent=43 // pred_check
          %p360 = pneg %p158
        $region58: #{tpu_custom_call.1} parent=43 // pred_check_branch
          %362 = sbr.rel (%p360) target = $region60
        $region59: #{tpu_custom_call.1} parent=43 // pred_region
          %364 = dma.done [#allocation9], 256
        $region60: #{tpu_custom_call.1} parent=43 // pred_fallthru
          _
        %s365 = sand.u32 %s54, 1
        %s366 = scalar_lea.sflag [#allocation3], %s365
        %s367 = sand.u32 %s54, 1
        %s368 = smul.addr %s367, 4
        %s369 = scalar_lea.vmem [#allocation2], %s368
        %p370 = pneg %p67
        %p371 = pneg %p64
        %s372 = sand.u32 %s32, 1
        %s373 = scalar_lea.sflag [#allocation6], %s372
        %s374 = sand.u32 %s82, 1
        %s375 = smul.addr %s374, 4
        %s376 = scalar_lea.vmem [#allocation5], %s375
        %p377 = pneg %p95
        %p378 = pneg %p92
        %p379 = pneg %p116
        %p380 = pneg %p113
        %p381 = pneg %p137
        %p382 = pneg %p134
        %p383 = pneg %p158
        %p384 = pneg %p155
        %p385 = pneg %p179
        %p386 = pneg %p176
        %p387 = pneg %p207
        %p388 = pneg %p204
        %s389 = sand.u32 %s194, 1
        %s390 = scalar_lea.sflag [#allocation4], %s389
        %s391 = sand.u32 %s194, 1
        %s392 = smul.addr %s391, 8
        %s393 = scalar_lea.vmem [#allocation10], %s392
        %p394 = pneg %p235
        %p395 = pneg %p232
        %s396 = sand.u32 %s222, 1
        %s397 = scalar_lea.sflag [#allocation12], %s396
        %s398 = sand.u32 %s222, 1
        %s399 = smul.addr %s398, 8
        %s400 = scalar_lea.vmem [#allocation11], %s399
        %v402 = vld [vmem:[%s339] sm:$0xf]
        %v403 = vld [vmem:[%s349] sm:$0xf]
        %v404 = vld [vmem:[#allocation7] sm:$0xf]
        %v405 = vld [vmem:[#allocation7 + $0x4] sm:$0xf]
        %v406 = vld [vmem:[#allocation7 + $0x8] sm:$0xf]
        %v407 = vld [vmem:[#allocation7 + $0xc] sm:$0xf]
        %v408 = vld [vmem:[%s3] sm:$0x1]
        %v410 = vperm.slane %v408, 0
        %v416 = vunpack.c.l.b16 %v404
        %v417 = vunpack.c.l.b16 %v405
        %v418 = vunpack.c.l.b16 %v406
        %v419 = vunpack.c.l.b16 %v407
        %v420 = vpack.c.b16 %v417, %v416
        %v421 = vpack.c.b16 %v419, %v418
        %vm424 = vcmask 261120
        %v426 = vsel %vm424, %v402, 0
        %428 = vmatpush.bf16.msra.mxu0 0
        %429 = vmatpush.bf16.msra.mxu0 0
        %430 = vmatpush.bf16.msra.mxu0 0
        %431 = vmatpush.bf16.msra.mxu0 0
        %432 = vmatpush.bf16.msra.mxu0 0
        %433 = vmatpush.bf16.msra.mxu0 0
        %434 = vmatpush.bf16.msra.mxu0 %v421
        %435 = vmatpush.bf16.msra.mxu0 %v420
        %436 = vmatmul.bf16.gmra.mxu0 %v426
        %v437 = vpop.f32.mrf.mxu0
        %v438 = vadd.f32 %v410, %v437
        %v439 = vpop.f32.mrf.mxu0
        %440 = vdwg.mxu0
        %v441 = vmul.f32 %v438, 0.25
        %v442 = vpack.c.bf16 %v441, %v441
        %v443 = vld [vmem:[#allocation8] sm:$0xf]
        %v444 = vld [vmem:[#allocation8 + $0x4] sm:$0xf]
        %v445 = vld [vmem:[#allocation8 + $0x8] sm:$0xf]
        %v446 = vld [vmem:[#allocation8 + $0xc] sm:$0xf]
        %v447 = vld [vmem:[%s5] sm:$0x1]
        %v449 = vperm.slane %v447, 0
        %v455 = vunpack.c.l.b16 %v443
        %v456 = vunpack.c.l.b16 %v444
        %v457 = vunpack.c.l.b16 %v445
        %v458 = vunpack.c.l.b16 %v446
        %v459 = vpack.c.b16 %v456, %v455
        %v460 = vpack.c.b16 %v458, %v457
        %v464 = vsel %vm424, %v403, 0
        %466 = vmatpush.bf16.msra.mxu0 0
        %467 = vmatpush.bf16.msra.mxu0 0
        %468 = vmatpush.bf16.msra.mxu0 0
        %469 = vmatpush.bf16.msra.mxu0 0
        %470 = vmatpush.bf16.msra.mxu0 0
        %471 = vmatpush.bf16.msra.mxu0 0
        %472 = vmatpush.bf16.msra.mxu0 %v460
        %473 = vmatpush.bf16.msra.mxu0 %v459
        %474 = vmatmul.bf16.gmra.mxu0 %v464
        %v475 = vpop.f32.mrf.mxu0
        %v476 = vadd.f32 %v449, %v475
        %v477 = vpop.f32.mrf.mxu0
        %478 = vdwg.mxu0
        %v479 = vpack.c.bf16 %v476, %v476
        %vm480 = vcmask 125952
        %481 = vst.msk [vmem:[%s393] sm:$0xf] %vm480, %v442
        %482 = vst.msk [vmem:[%s400] sm:$0xf] %vm480, %v479
        %484 = vrot.lane.b32.xlu0 %v442, 112
        %v485 = vpop.permute.xlu0 %484
        %s487 = scalar_lea.vmem %s393, 4 [#allocation10]
        %488 = vst.msk [vmem:[%s487] sm:$0xf] %vm480, %v485
        %490 = vrot.lane.b32.xlu0 %v479, 112
        %v491 = vpop.permute.xlu0 %490
        %s493 = scalar_lea.vmem %s400, 4 [#allocation11]
        %494 = vst.msk [vmem:[%s493] sm:$0xf] %vm480, %v491
        %s495 = sand.u32 %s194, 1
        %s496 = scalar_lea.sflag [#allocation4], %s495
        %s497 = sand.u32 %s194, 1
        %s498 = smul.addr %s497, 8
        %s499 = scalar_lea.vmem [#allocation10], %s498
        %s500 = sand.u32 %s222, 1
        %s501 = scalar_lea.sflag [#allocation12], %s500
        %s502 = sand.u32 %s222, 1
        %s503 = smul.addr %s502, 8
        %s504 = scalar_lea.vmem [#allocation11], %s503
        // Predicated region
        $region61: #{tpu_custom_call.1} parent=43 // pred_check
          %p505 = pneg %p204
        $region62: #{tpu_custom_call.1} parent=43 // pred_check_branch
          %507 = sbr.rel (%p505) target = $region64
        $region63: #{tpu_custom_call.1} parent=43 // pred_region
          %509 = vsyncadd %s496, 0
          %s510 = smul.addr %s36, 2
          %s511 = sadd.s32 %s37, %s510
          %s512 = smul.addr %s511, 4
          %s513 = scalar_lea.hbm %s6, %s512
          %s514 = sshll.u32 %s499, 4
          %s515 = int_to_ptr.vmem [resolvable:$true] %s514
          %s516 = sshll.u32 %s513, 4
          %s517 = int_to_ptr.hbm [resolvable:$true] %s516
          %522 = dma.vmem_to_hbm [thread:$0]  %s515, 128, %s517, %s496, 64, 64, 4
        $region64: #{tpu_custom_call.1} parent=43 // pred_fallthru
          _
        // Predicated region
        $region65: #{tpu_custom_call.1} parent=43 // pred_check
          %p523 = pneg %p232
        $region66: #{tpu_custom_call.1} parent=43 // pred_check_branch
          %525 = sbr.rel (%p523) target = $region68
        $region67: #{tpu_custom_call.1} parent=43 // pred_region
          %527 = vsyncadd %s501, 0
          %s528 = smul.addr %s36, 2
          %s529 = sadd.s32 %s37, %s528
          %s530 = smul.addr %s529, 4
          %s531 = scalar_lea.hbm %s7, %s530
          %s532 = sshll.u32 %s504, 4
          %s533 = int_to_ptr.vmem [resolvable:$true] %s532
          %s534 = sshll.u32 %s531, 4
          %s535 = int_to_ptr.hbm [resolvable:$true] %s534
          %540 = dma.vmem_to_hbm [thread:$0]  %s533, 128, %s535, %s501, 64, 64, 4
        $region68: #{tpu_custom_call.1} parent=43 // pred_fallthru
          _
      $region44: #{tpu_custom_call.1} parent=5 // pred_fallthru
        _
      %p541 = scmp.le.s32.totalorder 2, %s27
      // Predicated region
      $region69: #{tpu_custom_call.1} parent=5 // pred_check
        %p542 = pneg %p541
      $region70: #{tpu_custom_call.1} parent=5 // pred_check_branch
        %544 = sbr.rel (%p542) target = $region72
      $region71: #{tpu_custom_call.1} parent=5 // pred_region
        %s545 = ssub.s32 %s27, 2
        // Predicated region
        $region73: #{tpu_custom_call.1} parent=71 // pred_check
          %p546 = pneg %p210
        $region74: #{tpu_custom_call.1} parent=71 // pred_check_branch
          %548 = sbr.rel (%p546) target = $region76
        $region75: #{tpu_custom_call.1} parent=71 // pred_region
          %s549 = sand.u32 %s195, 1
          %s550 = scalar_lea.sflag [#allocation4], %s549
          %s551 = sand.u32 %s195, 1
          %s552 = smul.addr %s551, 8
          %s553 = scalar_lea.vmem [#allocation10], %s552
          %555 = dma.done %s550, 128
        $region76: #{tpu_custom_call.1} parent=71 // pred_fallthru
          _
        // Predicated region
        $region77: #{tpu_custom_call.1} parent=71 // pred_check
          %p556 = pneg %p238
        $region78: #{tpu_custom_call.1} parent=71 // pred_check_branch
          %558 = sbr.rel (%p556) target = $region80
        $region79: #{tpu_custom_call.1} parent=71 // pred_region
          %s559 = sand.u32 %s223, 1
          %s560 = scalar_lea.sflag [#allocation12], %s559
          %s561 = sand.u32 %s223, 1
          %s562 = smul.addr %s561, 8
          %s563 = scalar_lea.vmem [#allocation11], %s562
          %565 = dma.done %s560, 128
        $region80: #{tpu_custom_call.1} parent=71 // pred_fallthru
          _
      $region72: #{tpu_custom_call.1} parent=5 // pred_fallthru
        _
    $region6: #{tpu_custom_call.1} parent=1 // loop_footer
      %s31 = sadd.s32 1, %s27
    $region7: #{tpu_custom_call.1} parent=1 // loop_footer_branch
      %26 = sbr.rel target = $region3
    $region8: #{tpu_custom_call.1} parent=1 // loop_exit
      _
    %566 = vsyncpa [#allocation3], 1
    %s567 = scalar_lea.sflag [#allocation3], 1
    %568 = vsyncpa %s567, 1
    %569 = vsyncpa [#allocation6], 1
    %s570 = scalar_lea.sflag [#allocation6], 1
    %571 = vsyncpa %s570, 1
    %572 = vsyncpa [#allocation9], 1
    %573 = vsyncpa [#allocation4], 1
    %s574 = scalar_lea.sflag [#allocation4], 1
    %575 = vsyncpa %s574, 1
    %576 = vsyncpa [#allocation12], 1
    %s577 = scalar_lea.sflag [#allocation12], 1
    %578 = vsyncpa %s577, 1

</llo_original>
